<compile_context>
chip_gen: v5e
topology: v5e:2x2
jax: 0.10.0
libtpu: 0.0.40
codegen_flags: <defaults>
</compile_context>

<pallas_src>
import functools

import jax
import jax.numpy as jnp
from jax.experimental import pallas as pl
from jax.experimental.pallas import tpu as pltpu


# -----------------------------------------------------------------------------
# Pass 1: per-(sample, channel) sum and sum-of-squares of y = gamma*x + beta
# -----------------------------------------------------------------------------
def stats_kernel(x_ref, g_ref, b_ref, psum_ref, psq_ref, acc_s, acc_q, *, L, TL):
    l = pl.program_id(1)

    @pl.when(l == 0)
    def _init():
        acc_s[...] = jnp.zeros_like(acc_s)
        acc_q[...] = jnp.zeros_like(acc_q)

    # (1, C, TL); per-channel g/b blocks are (1, C, 1) and broadcast on the VPU.
    y = g_ref[...] * x_ref[...] + b_ref[...]

    if L % TL != 0:  # ragged last L-tile: zero out-of-range lanes (compile-time guard)
        lane = jax.lax.broadcasted_iota(jnp.int32, y.shape, 2)
        y = jnp.where(l * TL + lane < L, y, 0.0)

    acc_s[...] += y          # lane-wide VPU accumulation, no per-step XLU reduce
    acc_q[...] += y * y

    @pl.when(l == pl.num_programs(1) - 1)
    def _finish():
        psum_ref[...] = jnp.sum(acc_s[...], axis=2, keepdims=True)   # (1, C, 1)
        psq_ref[...] = jnp.sum(acc_q[...], axis=2, keepdims=True)


# -----------------------------------------------------------------------------
# Pass 2: y = gamma*x + beta ; out = relu(y * scale + shift)
# -----------------------------------------------------------------------------
def apply_kernel(x_ref, g_ref, b_ref, scale_ref, shift_ref, o_ref):
    y = g_ref[...] * x_ref[...] + b_ref[...]
    o_ref[...] = jnp.maximum(y * scale_ref[...] + shift_ref[...], 0.0).astype(o_ref.dtype)


# -----------------------------------------------------------------------------
# Wrapper helpers
# -----------------------------------------------------------------------------
def _prep_modulator(m, N, C, L):
    """Classify a modulator: resident per-channel ((1|N), C, 1) vs streamed full."""
    m = jnp.asarray(m, jnp.float32)
    if (m.ndim == 3 and m.shape[1] == C and m.shape[2] == 1
            and m.shape[0] in (1, N)):
        return jnp.broadcast_to(m, (N, C, 1)), False     # tiny, stays VMEM-resident
    return jnp.broadcast_to(m, (N, C, L)), True          # pixel-wise: stream like x


def _choose_tl(L, C, n_streams, max_tl, budget_bytes=12 << 20):
    """Largest lane tile (multiple of 128) whose double-buffered f32 streams fit
    the scoped-VMEM budget on all generations (v5e default 16 MiB is tightest)."""
    bytes_per_lane = max(1, n_streams) * 2 * C * 4
    tl = (budget_bytes // bytes_per_lane) // 128 * 128
    tl = max(128, min(max_tl, tl))
    if L <= tl:
        return L                  # single tile: block dim == full dim is always legal
    return tl


# -----------------------------------------------------------------------------
# Forward
# -----------------------------------------------------------------------------
def cond_layer_forward(x, gammas, betas, bn_weight, bn_bias,
                       *, eps=1e-5, block_lanes=2048):
    """x: (N, C, L).  gammas/betas: (N, C, L) pixel-wise or ((1|N), C, 1).
    bn_weight, bn_bias: (C,)."""
    x = jnp.asarray(x, jnp.float32)
    N, C, L = x.shape

    g3, g_full = _prep_modulator(gammas, N, C, L)
    b3, b_full = _prep_modulator(betas, N, C, L)

    # Streams per grid step (x + out + streamed modulators + 2 lane-wide scratch).
    n_streams = 2 + 2 * (int(g_full) + int(b_full)) + 2
    TL = _choose_tl(L, C, n_streams, block_lanes)
    grid = (N, pl.cdiv(L, TL))

    x_spec = pl.BlockSpec((1, C, TL), lambda n, l: (n, 0, l))
    chan_nc = pl.BlockSpec((1, C, 1), lambda n, l: (n, 0, 0))   # per-(n, C), resident over l
    chan_c = pl.BlockSpec((1, C, 1), lambda n, l: (0, 0, 0))    # per-channel, fully resident
    g_spec = x_spec if g_full else chan_nc
    b_spec = x_spec if b_full else chan_nc

    # ---- pass 1: partial batch statistics (N parallel, L sequential) --------
    stat_shape = jax.ShapeDtypeStruct((N, C, 1), jnp.float32)
    psum, psq = pl.pallas_call(
        functools.partial(stats_kernel, L=L, TL=TL),
        out_shape=(stat_shape, stat_shape),
        grid=grid,
        in_specs=[x_spec, g_spec, b_spec],
        out_specs=(chan_nc, chan_nc),
        scratch_shapes=[pltpu.VMEM((1, C, TL), jnp.float32),
                        pltpu.VMEM((1, C, TL), jnp.float32)],
        compiler_params=pltpu.CompilerParams(
            dimension_semantics=("parallel", "arbitrary")),
    )(x, g3, b3)

    # ---- fold partials -> per-channel scale/shift (C elements; plain XLA) ---
    count = float(N * L)
    mean = jnp.sum(psum, axis=0) / count                     # (C, 1)
    var = jnp.sum(psq, axis=0) / count - mean * mean         # biased variance
    var = jnp.maximum(var, 0.0)                              # cancellation safety
    w = bn_weight.reshape(C, 1).astype(jnp.float32)
    b = bn_bias.reshape(C, 1).astype(jnp.float32)
    scale_c = w * jax.lax.rsqrt(var + eps)
    shift_c = b - mean * scale_c
    scale = scale_c.reshape(1, C, 1)
    shift = shift_c.reshape(1, C, 1)

    # ---- pass 2: normalize + affine + relu (fully parallel, megacore) -------
    out = pl.pallas_call(
        apply_kernel,
        out_shape=jax.ShapeDtypeStruct((N, C, L), x.dtype),
        grid=grid,
        in_specs=[x_spec, g_spec, b_spec, chan_c, chan_c],
        out_specs=x_spec,
        compiler_params=pltpu.CompilerParams(
            dimension_semantics=("parallel", "parallel")),
    )(x, g3, b3, scale, shift)
    return out


# -----------------------------------------------------------------------------
# Pure-JAX reference (PyTorch training-mode BatchNorm1d forward)
# -----------------------------------------------------------------------------
def cond_layer_ref(x, gammas, betas, weight, bias, eps=1e-5):
    y = gammas * x + betas
    mean = jnp.mean(y, axis=(0, 2), keepdims=True)
    var = jnp.mean((y - mean) ** 2, axis=(0, 2), keepdims=True)  # biased
    yhat = (y - mean) * jax.lax.rsqrt(var + eps)
    out = weight.reshape(1, -1, 1) * yhat + bias.reshape(1, -1, 1)
    return jnp.maximum(out, 0.0)


if __name__ == "__main__":
    key = jax.random.PRNGKey(0)
    k1, k2, k3, k4, k5, k6, k7 = jax.random.split(key, 7)

    # --- test 1: pixel-wise modulation (module spec), ragged lane tiling -----
    N, C, L = 2, 32, 384
    x = jax.random.normal(k1, (N, C, L), jnp.float32)
    gammas = jax.random.normal(k2, (N, C, L), jnp.float32)
    betas = jax.random.normal(k3, (N, C, L), jnp.float32)
    bn_w = 1.0 + 0.1 * jax.random.normal(k4, (C,), jnp.float32)
    bn_b = 0.1 * jax.random.normal(k5, (C,), jnp.float32)

    out = jax.block_until_ready(
        cond_layer_forward(x, gammas, betas, bn_w, bn_b, block_lanes=256))
    ref = cond_layer_ref(x, gammas, betas, bn_w, bn_b)
    assert out.shape == (N, C, L)
    assert jnp.allclose(out, ref, atol=2e-3, rtol=2e-3), "pixel-wise path mismatch"

    # --- test 2: per-channel modulation -> resident (N, C, 1) fast path ------
    N2, C2, L2 = 2, 32, 512
    x2 = jax.random.normal(k6, (N2, C2, L2), jnp.float32)
    g2 = jax.random.normal(k7, (N2, C2, 1), jnp.float32)
    b2 = 0.5 * jnp.ones((1, C2, 1), jnp.float32)

    out2 = jax.block_until_ready(cond_layer_forward(x2, g2, b2, bn_w, bn_b))
    ref2 = cond_layer_ref(x2, g2, b2, bn_w, bn_b)
    assert out2.shape == (N2, C2, L2)
    assert jnp.allclose(out2, ref2, atol=2e-3, rtol=2e-3), "channel-wise path mismatch"

    print("KERNEL_OK")
</pallas_src>

<mosaic_0001>
module attributes {stable_mosaic.version = 11 : i64} {
  func.func @stats_kernel(%arg0: i32, %arg1: i32, %arg2: memref<1x32x256xf32, #tpu.memory_space<vmem>>, %arg3: memref<1x32x256xf32, #tpu.memory_space<vmem>>, %arg4: memref<1x32x256xf32, #tpu.memory_space<vmem>>, %arg5: memref<1x32x1xf32, #tpu.memory_space<vmem>>, %arg6: memref<1x32x1xf32, #tpu.memory_space<vmem>>, %arg7: memref<1x32x256xf32, #tpu.memory_space<vmem>>, %arg8: memref<1x32x256xf32, #tpu.memory_space<vmem>>) attributes {dimension_semantics = [#tpu.dimension_semantics<parallel>, #tpu.dimension_semantics<arbitrary>], iteration_bounds = array<i64: 2, 2>, scalar_prefetch = 0 : i64, scratch_operands = 2 : i64, tpu.core_type = #tpu.core_type<tc>, window_params = [{transform_indices = @transform_0, window_bounds = array<i64: 1, 32, 256>}, {transform_indices = @transform_1, window_bounds = array<i64: 1, 32, 256>}, {transform_indices = @transform_2, window_bounds = array<i64: 1, 32, 256>}, {transform_indices = @transform_3, window_bounds = array<i64: 1, 32, 1>}, {transform_indices = @transform_4, window_bounds = array<i64: 1, 32, 1>}]} {
    %c0_i32 = arith.constant 0 : i32
    %0 = arith.cmpi eq, %arg1, %c0_i32 : i32
    %1 = arith.extui %0 : i1 to i32
    %c0_i32_0 = arith.constant 0 : i32
    %2 = arith.cmpi ne, %1, %c0_i32_0 : i32
    scf.if %2 {
      %cst_22 = arith.constant 0.000000e+00 : f32
      %26 = vector.broadcast %cst_22 : f32 to vector<1x32x256xf32>
      %c0_23 = arith.constant 0 : index
      %c0_24 = arith.constant 0 : index
      %c0_25 = arith.constant 0 : index
      %27 = vector.load %arg7[%c0_23, %c0_24, %c0_25] : memref<1x32x256xf32, #tpu.memory_space<vmem>>, vector<1x32x256xf32>
      tpu.vector_store %arg7[%c0_23, %c0_24, %c0_25], %26 {strides = array<i32>} : memref<1x32x256xf32, #tpu.memory_space<vmem>>, vector<1x32x256xf32>,
      %cst_26 = arith.constant 0.000000e+00 : f32
      %28 = vector.broadcast %cst_26 : f32 to vector<1x32x256xf32>
      %c0_27 = arith.constant 0 : index
      %c0_28 = arith.constant 0 : index
      %c0_29 = arith.constant 0 : index
      %29 = vector.load %arg8[%c0_27, %c0_28, %c0_29] : memref<1x32x256xf32, #tpu.memory_space<vmem>>, vector<1x32x256xf32>
      tpu.vector_store %arg8[%c0_27, %c0_28, %c0_29], %28 {strides = array<i32>} : memref<1x32x256xf32, #tpu.memory_space<vmem>>, vector<1x32x256xf32>,
    } else {
    }
    %c0 = arith.constant 0 : index
    %c0_1 = arith.constant 0 : index
    %c0_2 = arith.constant 0 : index
    %3 = vector.load %arg3[%c0, %c0_1, %c0_2] : memref<1x32x256xf32, #tpu.memory_space<vmem>>, vector<1x32x256xf32>
    %c0_3 = arith.constant 0 : index
    %c0_4 = arith.constant 0 : index
    %c0_5 = arith.constant 0 : index
    %4 = vector.load %arg2[%c0_3, %c0_4, %c0_5] : memref<1x32x256xf32, #tpu.memory_space<vmem>>, vector<1x32x256xf32>
    %5 = arith.mulf %3, %4 : vector<1x32x256xf32>
    %c0_6 = arith.constant 0 : index
    %c0_7 = arith.constant 0 : index
    %c0_8 = arith.constant 0 : index
    %6 = vector.load %arg4[%c0_6, %c0_7, %c0_8] : memref<1x32x256xf32, #tpu.memory_space<vmem>>, vector<1x32x256xf32>
    %7 = arith.addf %5, %6 : vector<1x32x256xf32>
    %8 = tpu.iota {dimensions = array<i32: 2>} : vector<1x32x256xi32>
    %c256_i32 = arith.constant 256 : i32
    %9 = arith.muli %arg1, %c256_i32 : i32
    %10 = vector.broadcast %9 : i32 to vector<1x32x256xi32>
    %11 = arith.addi %10, %8 : vector<1x32x256xi32>
    %c384_i32 = arith.constant 384 : i32
    %12 = vector.broadcast %c384_i32 : i32 to vector<1x32x256xi32>
    %13 = arith.cmpi slt, %11, %12 : vector<1x32x256xi32>
    %cst = arith.constant 0.000000e+00 : f32
    %14 = vector.broadcast %cst : f32 to vector<1x32x256xf32>
    %15 = arith.select %13, %7, %14 : vector<1x32x256xi1>, vector<1x32x256xf32>
    %c0_9 = arith.constant 0 : index
    %c0_10 = arith.constant 0 : index
    %c0_11 = arith.constant 0 : index
    %16 = vector.load %arg7[%c0_9, %c0_10, %c0_11] : memref<1x32x256xf32, #tpu.memory_space<vmem>>, vector<1x32x256xf32>
    %17 = arith.addf %16, %15 : vector<1x32x256xf32>
    %c0_12 = arith.constant 0 : index
    %c0_13 = arith.constant 0 : index
    %c0_14 = arith.constant 0 : index
    %18 = vector.load %arg7[%c0_12, %c0_13, %c0_14] : memref<1x32x256xf32, #tpu.memory_space<vmem>>, vector<1x32x256xf32>
    tpu.vector_store %arg7[%c0_12, %c0_13, %c0_14], %17 {strides = array<i32>} : memref<1x32x256xf32, #tpu.memory_space<vmem>>, vector<1x32x256xf32>,
    %c0_15 = arith.constant 0 : index
    %c0_16 = arith.constant 0 : index
    %c0_17 = arith.constant 0 : index
    %19 = vector.load %arg8[%c0_15, %c0_16, %c0_17] : memref<1x32x256xf32, #tpu.memory_space<vmem>>, vector<1x32x256xf32>
    %20 = arith.mulf %15, %15 : vector<1x32x256xf32>
    %21 = arith.addf %19, %20 : vector<1x32x256xf32>
    %c0_18 = arith.constant 0 : index
    %c0_19 = arith.constant 0 : index
    %c0_20 = arith.constant 0 : index
    %22 = vector.load %arg8[%c0_18, %c0_19, %c0_20] : memref<1x32x256xf32, #tpu.memory_space<vmem>>, vector<1x32x256xf32>
    tpu.vector_store %arg8[%c0_18, %c0_19, %c0_20], %21 {strides = array<i32>} : memref<1x32x256xf32, #tpu.memory_space<vmem>>, vector<1x32x256xf32>,
    %c1_i32 = arith.constant 1 : i32
    %23 = arith.cmpi eq, %arg1, %c1_i32 : i32
    %24 = arith.extui %23 : i1 to i32
    %c0_i32_21 = arith.constant 0 : i32
    %25 = arith.cmpi ne, %24, %c0_i32_21 : i32
    scf.if %25 {
      %c0_22 = arith.constant 0 : index
      %c0_23 = arith.constant 0 : index
      %c0_24 = arith.constant 0 : index
      %26 = vector.load %arg7[%c0_22, %c0_23, %c0_24] : memref<1x32x256xf32, #tpu.memory_space<vmem>>, vector<1x32x256xf32>
      %cst_25 = arith.constant dense<0.000000e+00> : vector<1x32xf32>
      %27 = vector.multi_reduction <add>, %26, %cst_25 [2] : vector<1x32x256xf32> to vector<1x32xf32>
      %28 = vector.shape_cast %27 : vector<1x32xf32> to vector<1x32x1xf32>
      %c0_26 = arith.constant 0 : index
      %c0_27 = arith.constant 0 : index
      %c0_28 = arith.constant 0 : index
      %29 = vector.load %arg5[%c0_26, %c0_27, %c0_28] : memref<1x32x1xf32, #tpu.memory_space<vmem>>, vector<1x32x1xf32>
      tpu.vector_store %arg5[%c0_26, %c0_27, %c0_28], %28 {strides = array<i32>} : memref<1x32x1xf32, #tpu.memory_space<vmem>>, vector<1x32x1xf32>,
      %c0_29 = arith.constant 0 : index
      %c0_30 = arith.constant 0 : index
      %c0_31 = arith.constant 0 : index
      %30 = vector.load %arg8[%c0_29, %c0_30, %c0_31] : memref<1x32x256xf32, #tpu.memory_space<vmem>>, vector<1x32x256xf32>
      %cst_32 = arith.constant dense<0.000000e+00> : vector<1x32xf32>
      %31 = vector.multi_reduction <add>, %30, %cst_32 [2] : vector<1x32x256xf32> to vector<1x32xf32>
      %32 = vector.shape_cast %31 : vector<1x32xf32> to vector<1x32x1xf32>
      %c0_33 = arith.constant 0 : index
      %c0_34 = arith.constant 0 : index
      %c0_35 = arith.constant 0 : index
      %33 = vector.load %arg6[%c0_33, %c0_34, %c0_35] : memref<1x32x1xf32, #tpu.memory_space<vmem>>, vector<1x32x1xf32>
      tpu.vector_store %arg6[%c0_33, %c0_34, %c0_35], %32 {strides = array<i32>} : memref<1x32x1xf32, #tpu.memory_space<vmem>>, vector<1x32x1xf32>,
    } else {
    }
    return
  }
  func.func @transform_0(%arg0: i32, %arg1: i32) -> (i32, i32, i32) {
    %c0_i32 = arith.constant 0 : i32
    %c0_i32_0 = arith.constant 0 : i32
    return %arg0, %c0_i32, %arg1 : i32, i32, i32
  }
  func.func @transform_1(%arg0: i32, %arg1: i32) -> (i32, i32, i32) {
    %c0_i32 = arith.constant 0 : i32
    %c0_i32_0 = arith.constant 0 : i32
    return %arg0, %c0_i32, %arg1 : i32, i32, i32
  }
  func.func @transform_2(%arg0: i32, %arg1: i32) -> (i32, i32, i32) {
    %c0_i32 = arith.constant 0 : i32
    %c0_i32_0 = arith.constant 0 : i32
    return %arg0, %c0_i32, %arg1 : i32, i32, i32
  }
  func.func @transform_3(%arg0: i32, %arg1: i32) -> (i32, i32, i32) {
    %c0_i32 = arith.constant 0 : i32
    %c0_i32_0 = arith.constant 0 : i32
    %c0_i32_1 = arith.constant 0 : i32
    return %arg0, %c0_i32, %c0_i32_0 : i32, i32, i32
  }
  func.func @transform_4(%arg0: i32, %arg1: i32) -> (i32, i32, i32) {
    %c0_i32 = arith.constant 0 : i32
    %c0_i32_0 = arith.constant 0 : i32
    %c0_i32_1 = arith.constant 0 : i32
    return %arg0, %c0_i32, %c0_i32_0 : i32, i32, i32
  }
}

</mosaic_0001>

<llo_original>
// kernel: tpu_custom_call.1
$region0: #{tpu_custom_call.1}
  #allocation0 [shape = 'u32[]', space=smem, size = 0x4, offset = 0x4, fixed_abs, tag = 'smem constant byte address 0x4 - core index']
  #allocation1 [shape = 'u32[72,128]{1,0:T(1,128)}', space=vmem, size = 0x9000, scoped, tag = 'internal scratch']
  #allocation2 [shape = 'f32[1,32,256]{2,1,0:T(8,128)}', space=vmem, size = 0x8000, scoped, tag = 'scratch operand']
  #allocation3 [shape = 'f32[1,32,256]{2,1,0:T(8,128)}', space=vmem, size = 0x8000, scoped, tag = 'scratch operand']
  %s0 = inlined_call_operand.hbm [shape: f32[2,32,384], index: 0, kind: input, shape index: {}]
  %s1 = inlined_call_operand.hbm [shape: f32[2,32,384], index: 1, kind: input, shape index: {}]
  %s2 = inlined_call_operand.hbm [shape: f32[2,32,384], index: 2, kind: input, shape index: {}]
  %s3 = inlined_call_operand.vmem [shape: f32[2,32,1], index: 3, kind: output, shape index: {0}]
  %s4 = inlined_call_operand.vmem [shape: f32[2,32,1], index: 4, kind: output, shape index: {1}]
  %5 = xla_tuple %s3, %s4
  %s6 = sld [smem:[#allocation0]]
  $region73: #{tpu_custom_call.1} parent=0
    _
  %s8 = ssub.s32 1, %s6
  %s9 = scalar_select 0, %s8, %s6
  $region1: #{tpu_custom_call.1} parent=0
    #allocation4 [shape = 'u8[65536]{0}', space=vmem, size = 0x10000, scoped, tag = 'input window, operand 0']
    #allocation5 [shape = 's32[2]{0}', space=sflag, size = 0x8, scoped, tag = 'scoped memory for tpu_custom_call.1']
    #allocation6 [shape = 'u8[65536]{0}', space=vmem, size = 0x10000, scoped, tag = 'input window, operand 1']
    #allocation7 [shape = 's32[2]{0}', space=sflag, size = 0x8, scoped, tag = 'scoped memory for tpu_custom_call.1']
    #allocation8 [shape = 'u8[65536]{0}', space=vmem, size = 0x10000, scoped, tag = 'input window, operand 2']
    %10 = vsyncpa [#allocation5], 0
    %s11 = scalar_lea.sflag [#allocation5], 1
    %12 = vsyncpa %s11, 0
    %13 = vsyncpa [#allocation7], 0
    %s14 = scalar_lea.sflag [#allocation7], 1
    %15 = vsyncpa %s14, 0
    loop: start=0, step=1, limit=6
    $region2: #{tpu_custom_call.1} parent=1 // loop_pre_header
      _
    $region3: #{tpu_custom_call.1} parent=1 // loop_header
      %s17 = sphi 0, %s21
      %p18 = scmp.ge.s32.totalorder %s17, 6
      %s24 = sphi 0, %s36
      %s25 = sphi 0, %s32
      %s26 = sphi 0, %s24
      %s27 = sphi 0, %s25
      %s28 = sphi 0, %s26
      %s29 = sphi 0, %s27
      %s41 = sphi 0, %s43
      %s44 = sphi 0, %s41
      %s45 = sphi 0, %s44
      %s61 = sphi 0, %s45
      %s69 = sphi 0, %s71
      %s72 = sphi 0, %s69
      %s73 = sphi 0, %s72
      %s89 = sphi 0, %s73
      %s97 = sphi 0, %s99
      %s100 = sphi 0, %s97
      %s101 = sphi 0, %s100
      %s117 = sphi 0, %s101
      %s123 = sphi 0, %s125
      %s126 = sphi 0, %s123
      %s127 = sphi 0, %s126
      %s143 = sphi 0, %s127
      %s149 = sphi 0, %s151
      %s152 = sphi 0, %s149
      %s153 = sphi 0, %s152
      %s169 = sphi 0, %s153
    $region4: #{tpu_custom_call.1} parent=1 // loop_header_branch
      %20 = sbr.rel (%p18) target = $region8
    $region5: #{tpu_custom_call.1} parent=1 // loop_body
      %s22 = ssub.s32 %s17, 1
      %s23 = ssub.s32 %s17, 2
      %s30 = sadd.s32 1, %s25
      %p31 = scmp.ge.s32.totalorder %s30, 2
      %s32 = scalar_select %p31, 0, %s30
      %s33 = sadd.s32 1, %s24
      %s34 = scalar_select %p31, %s33, %s24
      %p35 = scmp.ge.s32.totalorder %s34, 2
      %s36 = scalar_select %p35, 0, %s34
      %s37 = ssub.s32 %s24, %s36
      %s38 = ssub.s32 %s25, %s32
      %s39 = sor.u32 %s37, %s38
      %p40 = scmp.eq.s32.totalorder %s39, 0
      %s42 = sadd.s32 %s41, 1
      %s43 = scalar_select %p40, %s41, %s42
      %p46 = pneg %p40
      %p47 = scmp.eq.s32.totalorder %s17, 3
      %p48 = por %p46, %p47
      %p49 = scmp.ne.s32.totalorder %s41, %s44
      %p50 = scmp.eq.s32.totalorder %s17, 0
      %p51 = por %p49, %p50
      %p52 = scmp.ne.s32.totalorder %s41, %s44
      %p53 = scmp.eq.s32.totalorder %s22, 3
      %p54 = por %p52, %p53
      %p55 = scmp.ne.s32.totalorder %s44, %s45
      %p56 = scmp.eq.s32.totalorder %s22, 0
      %p57 = por %p55, %p56
      %p58 = scmp.ne.s32.totalorder %s44, %s45
      %p59 = scmp.eq.s32.totalorder %s23, 3
      %p60 = por %p58, %p59
      %p62 = scmp.ne.s32.totalorder %s45, %s61
      %p63 = scmp.eq.s32.totalorder %s23, 0
      %p64 = por %p62, %p63
      %s65 = ssub.s32 %s24, %s36
      %s66 = ssub.s32 %s25, %s32
      %s67 = sor.u32 %s65, %s66
      %p68 = scmp.eq.s32.totalorder %s67, 0
      %s70 = sadd.s32 %s69, 1
      %s71 = scalar_select %p68, %s69, %s70
      %p74 = pneg %p68
      %p75 = scmp.eq.s32.totalorder %s17, 3
      %p76 = por %p74, %p75
      %p77 = scmp.ne.s32.totalorder %s69, %s72
      %p78 = scmp.eq.s32.totalorder %s17, 0
      %p79 = por %p77, %p78
      %p80 = scmp.ne.s32.totalorder %s69, %s72
      %p81 = scmp.eq.s32.totalorder %s22, 3
      %p82 = por %p80, %p81
      %p83 = scmp.ne.s32.totalorder %s72, %s73
      %p84 = scmp.eq.s32.totalorder %s22, 0
      %p85 = por %p83, %p84
      %p86 = scmp.ne.s32.totalorder %s72, %s73
      %p87 = scmp.eq.s32.totalorder %s23, 3
      %p88 = por %p86, %p87
      %p90 = scmp.ne.s32.totalorder %s73, %s89
      %p91 = scmp.eq.s32.totalorder %s23, 0
      %p92 = por %p90, %p91
      %s93 = ssub.s32 %s24, %s36
      %s94 = ssub.s32 %s25, %s32
      %s95 = sor.u32 %s93, %s94
      %p96 = scmp.eq.s32.totalorder %s95, 0
      %s98 = sadd.s32 %s97, 1
      %s99 = scalar_select %p96, %s97, %s98
      %p102 = pneg %p96
      %p103 = scmp.eq.s32.totalorder %s17, 3
      %p104 = por %p102, %p103
      %p105 = scmp.ne.s32.totalorder %s97, %s100
      %p106 = scmp.eq.s32.totalorder %s17, 0
      %p107 = por %p105, %p106
      %p108 = scmp.ne.s32.totalorder %s97, %s100
      %p109 = scmp.eq.s32.totalorder %s22, 3
      %p110 = por %p108, %p109
      %p111 = scmp.ne.s32.totalorder %s100, %s101
      %p112 = scmp.eq.s32.totalorder %s22, 0
      %p113 = por %p111, %p112
      %p114 = scmp.ne.s32.totalorder %s100, %s101
      %p115 = scmp.eq.s32.totalorder %s23, 3
      %p116 = por %p114, %p115
      %p118 = scmp.ne.s32.totalorder %s101, %s117
      %p119 = scmp.eq.s32.totalorder %s23, 0
      %p120 = por %p118, %p119
      %s121 = ssub.s32 %s24, %s36
      %p122 = scmp.eq.s32.totalorder %s121, 0
      %s124 = sadd.s32 %s123, 1
      %s125 = scalar_select %p122, %s123, %s124
      %p128 = pneg %p122
      %p129 = scmp.eq.s32.totalorder %s17, 3
      %p130 = por %p128, %p129
      %p131 = scmp.ne.s32.totalorder %s123, %s126
      %p132 = scmp.eq.s32.totalorder %s17, 0
      %p133 = por %p131, %p132
      %p134 = scmp.ne.s32.totalorder %s123, %s126
      %p135 = scmp.eq.s32.totalorder %s22, 3
      %p136 = por %p134, %p135
      %p137 = scmp.ne.s32.totalorder %s126, %s127
      %p138 = scmp.eq.s32.totalorder %s22, 0
      %p139 = por %p137, %p138
      %p140 = scmp.ne.s32.totalorder %s126, %s127
      %p141 = scmp.eq.s32.totalorder %s23, 3
      %p142 = por %p140, %p141
      %p144 = scmp.ne.s32.totalorder %s127, %s143
      %p145 = scmp.eq.s32.totalorder %s23, 0
      %p146 = por %p144, %p145
      %s147 = ssub.s32 %s24, %s36
      %p148 = scmp.eq.s32.totalorder %s147, 0
      %s150 = sadd.s32 %s149, 1
      %s151 = scalar_select %p148, %s149, %s150
      %p154 = pneg %p148
      %p155 = scmp.eq.s32.totalorder %s17, 3
      %p156 = por %p154, %p155
      %p157 = scmp.ne.s32.totalorder %s149, %s152
      %p158 = scmp.eq.s32.totalorder %s17, 0
      %p159 = por %p157, %p158
      %p160 = scmp.ne.s32.totalorder %s149, %s152
      %p161 = scmp.eq.s32.totalorder %s22, 3
      %p162 = por %p160, %p161
      %p163 = scmp.ne.s32.totalorder %s152, %s153
      %p164 = scmp.eq.s32.totalorder %s22, 0
      %p165 = por %p163, %p164
      %p166 = scmp.ne.s32.totalorder %s152, %s153
      %p167 = scmp.eq.s32.totalorder %s23, 3
      %p168 = por %p166, %p167
      %p170 = scmp.ne.s32.totalorder %s153, %s169
      %p171 = scmp.eq.s32.totalorder %s23, 0
      %p172 = por %p170, %p171
      %p173 = scmp.le.s32.totalorder 1, %s17
      %p174 = scmp.lt.s32.totalorder %s17, 5
      %p175 = pnand %p173, %p174
      %p176 = pneg %p175
      // Predicated region
      $region9: #{tpu_custom_call.1} parent=5 // pred_check
        _
      $region10: #{tpu_custom_call.1} parent=5 // pred_check_branch
        %178 = sbr.rel (%p175) target = $region12
      $region11: #{tpu_custom_call.1} parent=5 // pred_region
        %s179 = ssub.s32 %s17, 1
      $region12: #{tpu_custom_call.1} parent=5 // pred_fallthru
        _
      %p180 = scmp.lt.s32.totalorder %s17, 4
      // Predicated region
      $region13: #{tpu_custom_call.1} parent=5 // pred_check
        %p181 = pneg %p180
      $region14: #{tpu_custom_call.1} parent=5 // pred_check_branch
        %183 = sbr.rel (%p181) target = $region16
      $region15: #{tpu_custom_call.1} parent=5 // pred_region
        // Predicated region
        $region17: #{tpu_custom_call.1} parent=15 // pred_check
          %p184 = pneg %p51
        $region18: #{tpu_custom_call.1} parent=15 // pred_check_branch
          %186 = sbr.rel (%p184) target = $region20
        $region19: #{tpu_custom_call.1} parent=15 // pred_region
          %s187 = sand.u32 %s41, 1
          %s188 = scalar_lea.sflag [#allocation5], %s187
          %s189 = sand.u32 %s41, 1
          %s190 = smul.addr %s189, 64
          %s191 = scalar_lea.vmem [#allocation4], %s190
          %s192 = smul.u32 2, %s25
          %s193 = ssub.s32 3, %s192
          %p194 = scmp.lt.s32.totalorder %s193, 2
          %s195 = scalar_select %p194, %s193, 2
          %s196 = smul.u32 32, %s195
          %s197 = ssub.s32 64, %s196
          %s198 = sshll.u32 %s197, 4
          %199 = vsyncadd %s188, %s198
          %p200 = scmp.ne.s32.totalorder 0, %s196
          %s201 = smul.addr %s24, 12
          %s202 = sadd.s32 %s192, %s201
          %s203 = smul.addr %s202, 8
          %s204 = scalar_lea.hbm %s0, %s203
          %s205 = smul.u32 %s195, 8
          %s206 = smul.u32 %s205, 4
          %s207 = sshll.u32 %s204, 4
          %s208 = int_to_ptr.hbm [resolvable:$true] %s207
          %s209 = sshll.u32 %s191, 4
          %s210 = int_to_ptr.vmem [resolvable:$true] %s209
          %s211 = sshll.u32 %s206, 4
          %215 = dma.hbm_to_vmem [thread:$0]  (%p200), %s208, %s211, %s210, %s188, 384, 256, %s205
        $region20: #{tpu_custom_call.1} parent=15 // pred_fallthru
          _
        // Predicated region
        $region21: #{tpu_custom_call.1} parent=15 // pred_check
          %p216 = pneg %p79
        $region22: #{tpu_custom_call.1} parent=15 // pred_check_branch
          %218 = sbr.rel (%p216) target = $region24
        $region23: #{tpu_custom_call.1} parent=15 // pred_region
          %s219 = sand.u32 %s17, 1
          %s220 = scalar_lea.sflag [#allocation7], %s219
          %s221 = sand.u32 %s69, 1
          %s222 = smul.addr %s221, 64
          %s223 = scalar_lea.vmem [#allocation6], %s222
          %s224 = smul.u32 2, %s25
          %s225 = ssub.s32 3, %s224
          %p226 = scmp.lt.s32.totalorder %s225, 2
          %s227 = scalar_select %p226, %s225, 2
          %s228 = smul.u32 32, %s227
          %s229 = ssub.s32 64, %s228
          %s230 = sshll.u32 %s229, 4
          %231 = vsyncadd %s220, %s230
          %p232 = scmp.ne.s32.totalorder 0, %s228
          %s233 = smul.addr %s24, 12
          %s234 = sadd.s32 %s224, %s233
          %s235 = smul.addr %s234, 8
          %s236 = scalar_lea.hbm %s1, %s235
          %s237 = smul.u32 %s227, 8
          %s238 = smul.u32 %s237, 4
          %s239 = sshll.u32 %s236, 4
          %s240 = int_to_ptr.hbm [resolvable:$true] %s239
          %s241 = sshll.u32 %s223, 4
          %s242 = int_to_ptr.vmem [resolvable:$true] %s241
          %s243 = sshll.u32 %s238, 4
          %247 = dma.hbm_to_vmem [thread:$0]  (%p232), %s240, %s243, %s242, %s220, 384, 256, %s237
        $region24: #{tpu_custom_call.1} parent=15 // pred_fallthru
          _
        // Predicated region
        $region25: #{tpu_custom_call.1} parent=15 // pred_check
          %p248 = pneg %p107
        $region26: #{tpu_custom_call.1} parent=15 // pred_check_branch
          %250 = sbr.rel (%p248) target = $region28
        $region27: #{tpu_custom_call.1} parent=15 // pred_region
          %s251 = sand.u32 %s17, 1
          %s252 = scalar_lea.sflag [#allocation7], %s251
          %s253 = sand.u32 %s97, 1
          %s254 = smul.addr %s253, 64
          %s255 = scalar_lea.vmem [#allocation8], %s254
          %s256 = smul.u32 2, %s25
          %s257 = ssub.s32 3, %s256
          %p258 = scmp.lt.s32.totalorder %s257, 2
          %s259 = scalar_select %p258, %s257, 2
          %s260 = smul.u32 32, %s259
          %s261 = ssub.s32 64, %s260
          %s262 = sshll.u32 %s261, 4
          %263 = vsyncadd %s252, %s262
          %p264 = scmp.ne.s32.totalorder 0, %s260
          %s265 = smul.addr %s24, 12
          %s266 = sadd.s32 %s256, %s265
          %s267 = smul.addr %s266, 8
          %s268 = scalar_lea.hbm %s2, %s267
          %s269 = smul.u32 %s259, 8
          %s270 = smul.u32 %s269, 4
          %s271 = sshll.u32 %s268, 4
          %s272 = int_to_ptr.hbm [resolvable:$true] %s271
          %s273 = sshll.u32 %s255, 4
          %s274 = int_to_ptr.vmem [resolvable:$true] %s273
          %s275 = sshll.u32 %s270, 4
          %279 = dma.hbm_to_vmem [thread:$0]  (%p264), %s272, %s275, %s274, %s252, 384, 256, %s269
        $region28: #{tpu_custom_call.1} parent=15 // pred_fallthru
          _
      $region16: #{tpu_custom_call.1} parent=5 // pred_fallthru
        _
      %p280 = scmp.le.s32.totalorder 1, %s17
      %p281 = scmp.lt.s32.totalorder %s17, 5
      %p282 = pnand %p280, %p281
      %p283 = pneg %p282
      // Predicated region
      $region29: #{tpu_custom_call.1} parent=5 // pred_check
        _
      $region30: #{tpu_custom_call.1} parent=5 // pred_check_branch
        %285 = sbr.rel (%p282) target = $region32
      $region31: #{tpu_custom_call.1} parent=5 // pred_region
        %s286 = ssub.s32 %s17, 1
        %s287 = sand.u32 %s44, 1
        %s288 = scalar_lea.sflag [#allocation5], %s287
        %s289 = sand.u32 %s44, 1
        %s290 = smul.addr %s289, 64
        %s291 = scalar_lea.vmem [#allocation4], %s290
        // Predicated region
        $region33: #{tpu_custom_call.1} parent=31 // pred_check
          %p292 = pneg %p57
        $region34: #{tpu_custom_call.1} parent=31 // pred_check_branch
          %294 = sbr.rel (%p292) target = $region36
        $region35: #{tpu_custom_call.1} parent=31 // pred_region
          %296 = dma.done %s288, 1024
        $region36: #{tpu_custom_call.1} parent=31 // pred_fallthru
          _
        %s297 = sand.u32 %s22, 1
        %s298 = scalar_lea.sflag [#allocation7], %s297
        %s299 = sand.u32 %s72, 1
        %s300 = smul.addr %s299, 64
        %s301 = scalar_lea.vmem [#allocation6], %s300
        // Predicated region
        $region37: #{tpu_custom_call.1} parent=31 // pred_check
          %p302 = pneg %p85
        $region38: #{tpu_custom_call.1} parent=31 // pred_check_branch
          %304 = sbr.rel (%p302) target = $region40
        $region39: #{tpu_custom_call.1} parent=31 // pred_region
          %306 = dma.done %s298, 1024
        $region40: #{tpu_custom_call.1} parent=31 // pred_fallthru
          _
        %s307 = sand.u32 %s22, 1
        %s308 = scalar_lea.sflag [#allocation7], %s307
        %s309 = sand.u32 %s100, 1
        %s310 = smul.addr %s309, 64
        %s311 = scalar_lea.vmem [#allocation8], %s310
        // Predicated region
        $region41: #{tpu_custom_call.1} parent=31 // pred_check
          %p312 = pneg %p113
        $region42: #{tpu_custom_call.1} parent=31 // pred_check_branch
          %314 = sbr.rel (%p312) target = $region44
        $region43: #{tpu_custom_call.1} parent=31 // pred_region
          %316 = dma.done %s308, 1024
        $region44: #{tpu_custom_call.1} parent=31 // pred_fallthru
          _
        %s317 = sand.u32 %s44, 1
        %s318 = scalar_lea.sflag [#allocation5], %s317
        %s319 = sand.u32 %s44, 1
        %s320 = smul.addr %s319, 64
        %s321 = scalar_lea.vmem [#allocation4], %s320
        %p322 = pneg %p57
        %p323 = pneg %p54
        %s324 = sand.u32 %s22, 1
        %s325 = scalar_lea.sflag [#allocation7], %s324
        %s326 = sand.u32 %s72, 1
        %s327 = smul.addr %s326, 64
        %s328 = scalar_lea.vmem [#allocation6], %s327
        %p329 = pneg %p85
        %p330 = pneg %p82
        %s331 = sand.u32 %s22, 1
        %s332 = scalar_lea.sflag [#allocation7], %s331
        %s333 = sand.u32 %s100, 1
        %s334 = smul.addr %s333, 64
        %s335 = scalar_lea.vmem [#allocation8], %s334
        %p336 = pneg %p113
        %p337 = pneg %p110
        %p338 = pneg %p139
        %p339 = pneg %p136
        %p340 = scmp.lt.s32.totalorder %s26, 1
        %s341 = scalar_select %p340, %s26, 1
        %s342 = smul.addr %s341, 4
        %s343 = smul.addr %s342, 8
        %s344 = scalar_lea.vmem %s3, %s343
        %p345 = pneg %p165
        %p346 = pneg %p162
        %p347 = scmp.lt.s32.totalorder %s26, 1
        %s348 = scalar_select %p347, %s26, 1
        %s349 = smul.addr %s348, 4
        %s350 = smul.addr %s349, 8
        %s351 = scalar_lea.vmem %s4, %s350
        %s352 = smul.u32 2, %s27
        %s353 = ssub.s32 3, %s352
        %p354 = scmp.lt.s32.totalorder %s353, 2
        %s355 = scalar_select %p354, %s353, 2
        %s356 = smul.u32 32, %s355
        %s357 = smul.u32 2, %s27
        %s358 = ssub.s32 3, %s357
        %p359 = scmp.lt.s32.totalorder %s358, 2
        %s360 = scalar_select %p359, %s358, 2
        %s361 = smul.u32 32, %s360
        %s362 = smul.u32 2, %s27
        %s363 = ssub.s32 3, %s362
        %p364 = scmp.lt.s32.totalorder %s363, 2
        %s365 = scalar_select %p364, %s363, 2
        %s366 = smul.u32 32, %s365
        %p367 = scmp.lt.s32.totalorder %s26, 1
        %s368 = scalar_select %p367, %s26, 1
        %s369 = smul.addr %s368, 4
        %s370 = smul.addr %s369, 8
        %s371 = scalar_lea.vmem %s3, %s370
        %p372 = scmp.lt.s32.totalorder %s26, 1
        %s373 = scalar_select %p372, %s26, 1
        %s374 = smul.addr %s373, 4
        %s375 = smul.addr %s374, 8
        %s376 = scalar_lea.vmem %s4, %s375
        %p377 = scmp.eq.s32.totalorder %s27, 0
        // Predicated region
        $region45: #{tpu_custom_call.1} parent=31 // pred_check
          %p378 = pneg %p377
        $region46: #{tpu_custom_call.1} parent=31 // pred_check_branch
          %380 = sbr.rel (%p378) target = $region48
        $region47: #{tpu_custom_call.1} parent=31 // pred_region
          %381 = vst [vmem:[#allocation2] sm:$0xff] 0.0
          %382 = vst [vmem:[#allocation2 + $0x8] sm:$0xff] 0.0
          %383 = vst [vmem:[#allocation2 + $0x10] sm:$0xff] 0.0
          %384 = vst [vmem:[#allocation2 + $0x18] sm:$0xff] 0.0
          %385 = vst [vmem:[#allocation2 + $0x20] sm:$0xff] 0.0
          %386 = vst [vmem:[#allocation2 + $0x28] sm:$0xff] 0.0
          %387 = vst [vmem:[#allocation2 + $0x30] sm:$0xff] 0.0
          %388 = vst [vmem:[#allocation2 + $0x38] sm:$0xff] 0.0
          %389 = vst [vmem:[#allocation3] sm:$0xff] 0.0
          %390 = vst [vmem:[#allocation3 + $0x8] sm:$0xff] 0.0
          %391 = vst [vmem:[#allocation3 + $0x10] sm:$0xff] 0.0
          %392 = vst [vmem:[#allocation3 + $0x18] sm:$0xff] 0.0
          %393 = vst [vmem:[#allocation3 + $0x20] sm:$0xff] 0.0
          %394 = vst [vmem:[#allocation3 + $0x28] sm:$0xff] 0.0
          %395 = vst [vmem:[#allocation3 + $0x30] sm:$0xff] 0.0
          %396 = vst [vmem:[#allocation3 + $0x38] sm:$0xff] 0.0
        $region48: #{tpu_custom_call.1} parent=31 // pred_fallthru
          _
        %v397 = vld [vmem:[%s301] sm:$0xff]
        %v398 = vld [vmem:[%s301 + $0x8] sm:$0xff]
        %v399 = vld [vmem:[%s301 + $0x10] sm:$0xff]
        %v400 = vld [vmem:[%s301 + $0x18] sm:$0xff]
        %v401 = vld [vmem:[%s301 + $0x20] sm:$0xff]
        %v402 = vld [vmem:[%s301 + $0x28] sm:$0xff]
        %v403 = vld [vmem:[%s301 + $0x30] sm:$0xff]
        %v404 = vld [vmem:[%s301 + $0x38] sm:$0xff]
        %v405 = vld [vmem:[%s291] sm:$0xff]
        %v406 = vld [vmem:[%s291 + $0x8] sm:$0xff]
        %v407 = vld [vmem:[%s291 + $0x10] sm:$0xff]
        %v408 = vld [vmem:[%s291 + $0x18] sm:$0xff]
        %v409 = vld [vmem:[%s291 + $0x20] sm:$0xff]
        %v410 = vld [vmem:[%s291 + $0x28] sm:$0xff]
        %v411 = vld [vmem:[%s291 + $0x30] sm:$0xff]
        %v412 = vld [vmem:[%s291 + $0x38] sm:$0xff]
        %v413 = vmul.f32 %v397, %v405
        %v414 = vmul.f32 %v398, %v406
        %v415 = vmul.f32 %v399, %v407
        %v416 = vmul.f32 %v400, %v408
        %v417 = vmul.f32 %v401, %v409
        %v418 = vmul.f32 %v402, %v410
        %v419 = vmul.f32 %v403, %v411
        %v420 = vmul.f32 %v404, %v412
        %v421 = vld [vmem:[%s311] sm:$0xff]
        %v422 = vld [vmem:[%s311 + $0x8] sm:$0xff]
        %v423 = vld [vmem:[%s311 + $0x10] sm:$0xff]
        %v424 = vld [vmem:[%s311 + $0x18] sm:$0xff]
        %v425 = vld [vmem:[%s311 + $0x20] sm:$0xff]
        %v426 = vld [vmem:[%s311 + $0x28] sm:$0xff]
        %v427 = vld [vmem:[%s311 + $0x30] sm:$0xff]
        %v428 = vld [vmem:[%s311 + $0x38] sm:$0xff]
        %v429 = vadd.f32 %v413, %v421
        %v430 = vadd.f32 %v414, %v422
        %v431 = vadd.f32 %v415, %v423
        %v432 = vadd.f32 %v416, %v424
        %v433 = vadd.f32 %v417, %v425
        %v434 = vadd.f32 %v418, %v426
        %v435 = vadd.f32 %v419, %v427
        %v436 = vadd.f32 %v420, %v428
        %v437 = vlaneseq
        %v438 = vand.u32 %v437, 127
        %v439 = vadd.s32 %v438, 128
        %s440 = smul.u32 %s27, 256
        %v441 = vstv %s440
        %v442 = vadd.s32 %v441, %v438
        %v443 = vadd.s32 %v441, %v439
        %vm444 = vcmp.lt.s32.totalorder %v442, 384
        %vm445 = vcmp.lt.s32.totalorder %v443, 384
        %v446 = vsel %vm444, %v429, 0.0
        %v447 = vsel %vm445, %v430, 0.0
        %v448 = vsel %vm444, %v431, 0.0
        %v449 = vsel %vm445, %v432, 0.0
        %v450 = vsel %vm444, %v433, 0.0
        %v451 = vsel %vm445, %v434, 0.0
        %v452 = vsel %vm444, %v435, 0.0
        %v453 = vsel %vm445, %v436, 0.0
        %v454 = vld [vmem:[#allocation2] sm:$0xff]
        %v455 = vld [vmem:[#allocation2 + $0x8] sm:$0xff]
        %v456 = vld [vmem:[#allocation2 + $0x10] sm:$0xff]
        %v457 = vld [vmem:[#allocation2 + $0x18] sm:$0xff]
        %v458 = vld [vmem:[#allocation2 + $0x20] sm:$0xff]
        %v459 = vld [vmem:[#allocation2 + $0x28] sm:$0xff]
        %v460 = vld [vmem:[#allocation2 + $0x30] sm:$0xff]
        %v461 = vld [vmem:[#allocation2 + $0x38] sm:$0xff]
        %v462 = vadd.f32 %v454, %v446
        %v463 = vadd.f32 %v455, %v447
        %v464 = vadd.f32 %v456, %v448
        %v465 = vadd.f32 %v457, %v449
        %v466 = vadd.f32 %v458, %v450
        %v467 = vadd.f32 %v459, %v451
        %v468 = vadd.f32 %v460, %v452
        %v469 = vadd.f32 %v461, %v453
        %470 = vst [vmem:[#allocation2] sm:$0xff] %v462
        %471 = vst [vmem:[#allocation2 + $0x8] sm:$0xff] %v463
        %472 = vst [vmem:[#allocation2 + $0x10] sm:$0xff] %v464
        %473 = vst [vmem:[#allocation2 + $0x18] sm:$0xff] %v465
        %474 = vst [vmem:[#allocation2 + $0x20] sm:$0xff] %v466
        %475 = vst [vmem:[#allocation2 + $0x28] sm:$0xff] %v467
        %476 = vst [vmem:[#allocation2 + $0x30] sm:$0xff] %v468
        %477 = vst [vmem:[#allocation2 + $0x38] sm:$0xff] %v469
        %v478 = vld [vmem:[#allocation3] sm:$0xff]
        %v479 = vld [vmem:[#allocation3 + $0x8] sm:$0xff]
        %v480 = vld [vmem:[#allocation3 + $0x10] sm:$0xff]
        %v481 = vld [vmem:[#allocation3 + $0x18] sm:$0xff]
        %v482 = vld [vmem:[#allocation3 + $0x20] sm:$0xff]
        %v483 = vld [vmem:[#allocation3 + $0x28] sm:$0xff]
        %v484 = vld [vmem:[#allocation3 + $0x30] sm:$0xff]
        %v485 = vld [vmem:[#allocation3 + $0x38] sm:$0xff]
        %v486 = vmul.f32 %v446, %v446
        %v487 = vmul.f32 %v447, %v447
        %v488 = vmul.f32 %v448, %v448
        %v489 = vmul.f32 %v449, %v449
        %v490 = vmul.f32 %v450, %v450
        %v491 = vmul.f32 %v451, %v451
        %v492 = vmul.f32 %v452, %v452
        %v493 = vmul.f32 %v453, %v453
        %v494 = vadd.f32 %v478, %v486
        %v495 = vadd.f32 %v479, %v487
        %v496 = vadd.f32 %v480, %v488
        %v497 = vadd.f32 %v481, %v489
        %v498 = vadd.f32 %v482, %v490
        %v499 = vadd.f32 %v483, %v491
        %v500 = vadd.f32 %v484, %v492
        %v501 = vadd.f32 %v485, %v493
        %502 = vst [vmem:[#allocation3] sm:$0xff] %v494
        %503 = vst [vmem:[#allocation3 + $0x8] sm:$0xff] %v495
        %504 = vst [vmem:[#allocation3 + $0x10] sm:$0xff] %v496
        %505 = vst [vmem:[#allocation3 + $0x18] sm:$0xff] %v497
        %506 = vst [vmem:[#allocation3 + $0x20] sm:$0xff] %v498
        %507 = vst [vmem:[#allocation3 + $0x28] sm:$0xff] %v499
        %508 = vst [vmem:[#allocation3 + $0x30] sm:$0xff] %v500
        %509 = vst [vmem:[#allocation3 + $0x38] sm:$0xff] %v501
        %p510 = scmp.eq.s32.totalorder %s27, 1
        // Predicated region
        $region49: #{tpu_custom_call.1} parent=31 // pred_check
          %p511 = pneg %p510
        $region50: #{tpu_custom_call.1} parent=31 // pred_check_branch
          %513 = sbr.rel (%p511) target = $region52
        $region51: #{tpu_custom_call.1} parent=31 // pred_region
          %v514 = vld [vmem:[#allocation2] sm:$0xff]
          %v515 = vld [vmem:[#allocation2 + $0x8] sm:$0xff]
          %v516 = vld [vmem:[#allocation2 + $0x10] sm:$0xff]
          %v517 = vld [vmem:[#allocation2 + $0x18] sm:$0xff]
          %v518 = vld [vmem:[#allocation2 + $0x20] sm:$0xff]
          %v519 = vld [vmem:[#allocation2 + $0x28] sm:$0xff]
          %v520 = vld [vmem:[#allocation2 + $0x30] sm:$0xff]
          %v521 = vld [vmem:[#allocation2 + $0x38] sm:$0xff]
          %v522 = vadd.f32 %v514, %v515
          %523 = vadd.xlane.f32.xlu0 %v522
          %v524 = vpop.xlane.xlu0 %523
          %v525 = vadd.f32 %v516, %v517
          %526 = vadd.xlane.f32.xlu0 %v525
          %v527 = vpop.xlane.xlu0 %526
          %v528 = vadd.f32 %v518, %v519
          %529 = vadd.xlane.f32.xlu0 %v528
          %v530 = vpop.xlane.xlu0 %529
          %v531 = vadd.f32 %v520, %v521
          %532 = vadd.xlane.f32.xlu0 %v531
          %v533 = vpop.xlane.xlu0 %532
          %vm534 = vcmask 7168
          %535 = vst.msk [vmem:[%s371] sm:$0xff] %vm534, %v524
          %536 = vst.msk [vmem:[%s371 + $0x8] sm:$0xff] %vm534, %v527
          %537 = vst.msk [vmem:[%s371 + $0x10] sm:$0xff] %vm534, %v530
          %538 = vst.msk [vmem:[%s371 + $0x18] sm:$0xff] %vm534, %v533
          %v539 = vld [vmem:[#allocation3] sm:$0xff]
          %v540 = vld [vmem:[#allocation3 + $0x8] sm:$0xff]
          %v541 = vld [vmem:[#allocation3 + $0x10] sm:$0xff]
          %v542 = vld [vmem:[#allocation3 + $0x18] sm:$0xff]
          %v543 = vld [vmem:[#allocation3 + $0x20] sm:$0xff]
          %v544 = vld [vmem:[#allocation3 + $0x28] sm:$0xff]
          %v545 = vld [vmem:[#allocation3 + $0x30] sm:$0xff]
          %v546 = vld [vmem:[#allocation3 + $0x38] sm:$0xff]
          %v547 = vadd.f32 %v539, %v540
          %548 = vadd.xlane.f32.xlu0 %v547
          %v549 = vpop.xlane.xlu0 %548
          %v550 = vadd.f32 %v541, %v542
          %551 = vadd.xlane.f32.xlu0 %v550
          %v552 = vpop.xlane.xlu0 %551
          %v553 = vadd.f32 %v543, %v544
          %554 = vadd.xlane.f32.xlu0 %v553
          %v555 = vpop.xlane.xlu0 %554
          %v556 = vadd.f32 %v545, %v546
          %557 = vadd.xlane.f32.xlu0 %v556
          %v558 = vpop.xlane.xlu0 %557
          %559 = vst.msk [vmem:[%s376] sm:$0xff] %vm534, %v549
          %560 = vst.msk [vmem:[%s376 + $0x8] sm:$0xff] %vm534, %v552
          %561 = vst.msk [vmem:[%s376 + $0x10] sm:$0xff] %vm534, %v555
          %562 = vst.msk [vmem:[%s376 + $0x18] sm:$0xff] %vm534, %v558
        $region52: #{tpu_custom_call.1} parent=31 // pred_fallthru
          _
        %p563 = scmp.lt.s32.totalorder %s26, 1
        %s564 = scalar_select %p563, %s26, 1
        %s565 = smul.addr %s564, 4
        %s566 = smul.addr %s565, 8
        %s567 = scalar_lea.vmem %s3, %s566
        %p568 = scmp.lt.s32.totalorder %s26, 1
        %s569 = scalar_select %p568, %s26, 1
        %s570 = smul.addr %s569, 4
        %s571 = smul.addr %s570, 8
        %s572 = scalar_lea.vmem %s4, %s571
        // Predicated region
        $region53: #{tpu_custom_call.1} parent=31 // pred_check
          %p573 = pneg %p136
        $region54: #{tpu_custom_call.1} parent=31 // pred_check_branch
          %575 = sbr.rel (%p573) target = $region56
        $region55: #{tpu_custom_call.1} parent=31 // pred_region
          _
        $region56: #{tpu_custom_call.1} parent=31 // pred_fallthru
          _
        // Predicated region
        $region57: #{tpu_custom_call.1} parent=31 // pred_check
          %p576 = pneg %p162
        $region58: #{tpu_custom_call.1} parent=31 // pred_check_branch
          %578 = sbr.rel (%p576) target = $region60
        $region59: #{tpu_custom_call.1} parent=31 // pred_region
          _
        $region60: #{tpu_custom_call.1} parent=31 // pred_fallthru
          _
      $region32: #{tpu_custom_call.1} parent=5 // pred_fallthru
        _
      %p579 = scmp.le.s32.totalorder 2, %s17
      // Predicated region
      $region61: #{tpu_custom_call.1} parent=5 // pred_check
        %p580 = pneg %p579
      $region62: #{tpu_custom_call.1} parent=5 // pred_check_branch
        %582 = sbr.rel (%p580) target = $region64
      $region63: #{tpu_custom_call.1} parent=5 // pred_region
        %s583 = ssub.s32 %s17, 2
        // Predicated region
        $region65: #{tpu_custom_call.1} parent=63 // pred_check
          %p584 = pneg %p142
        $region66: #{tpu_custom_call.1} parent=63 // pred_check_branch
          %586 = sbr.rel (%p584) target = $region68
        $region67: #{tpu_custom_call.1} parent=63 // pred_region
          %p587 = scmp.lt.s32.totalorder %s28, 1
          %s588 = scalar_select %p587, %s28, 1
          %s589 = smul.addr %s588, 4
          %s590 = smul.addr %s589, 8
          %s591 = scalar_lea.vmem %s3, %s590
        $region68: #{tpu_custom_call.1} parent=63 // pred_fallthru
          _
        // Predicated region
        $region69: #{tpu_custom_call.1} parent=63 // pred_check
          %p592 = pneg %p168
        $region70: #{tpu_custom_call.1} parent=63 // pred_check_branch
          %594 = sbr.rel (%p592) target = $region72
        $region71: #{tpu_custom_call.1} parent=63 // pred_region
          %p595 = scmp.lt.s32.totalorder %s28, 1
          %s596 = scalar_select %p595, %s28, 1
          %s597 = smul.addr %s596, 4
          %s598 = smul.addr %s597, 8
          %s599 = scalar_lea.vmem %s4, %s598
        $region72: #{tpu_custom_call.1} parent=63 // pred_fallthru
          _
      $region64: #{tpu_custom_call.1} parent=5 // pred_fallthru
        _
    $region6: #{tpu_custom_call.1} parent=1 // loop_footer
      %s21 = sadd.s32 1, %s17
    $region7: #{tpu_custom_call.1} parent=1 // loop_footer_branch
      %16 = sbr.rel target = $region3
    $region8: #{tpu_custom_call.1} parent=1 // loop_exit
      _
    %600 = vsyncpa [#allocation5], 1
    %s601 = scalar_lea.sflag [#allocation5], 1
    %602 = vsyncpa %s601, 1
    %603 = vsyncpa [#allocation7], 1
    %s604 = scalar_lea.sflag [#allocation7], 1
    %605 = vsyncpa %s604, 1

</llo_original>
